<compile_context>
chip_gen: v6e
topology: v6e:2x2x1
jax: 0.10.0
libtpu: 0.0.40
codegen_flags: <defaults>
</compile_context>

<pallas_src>
import jax
import jax.numpy as jnp
from jax.experimental import pallas as pl
from jax.experimental.pallas import tpu as pltpu


# ----------------------------- kernel ---------------------------------------
def critic_kernel(s_ref, a_ref, w1s_ref, w1a_ref, b1_ref, w2_ref, b2_ref,
                  w3_ref, b3_ref, o_ref):
    # s_ref : [bm, S]   a_ref : [bm, A]
    # w1s   : [S, H]    w1a   : [A, H]    b1 : [1, H]
    # w2    : [H, H]    b2    : [1, H]
    # w3    : [1, H]    b3    : [1, 1]
    # o_ref : [bm, 1]

    # fc1 on the split inputs (the torch.cat is fused into two accumulating dots)
    h1 = (jnp.dot(s_ref[...], w1s_ref[...], preferred_element_type=jnp.float32)
          + jnp.dot(a_ref[...], w1a_ref[...], preferred_element_type=jnp.float32)
          + b1_ref[...])
    h1 = jnp.maximum(h1, 0.0)

    # fc2
    h2 = jnp.dot(h1, w2_ref[...], preferred_element_type=jnp.float32) + b2_ref[...]
    h2 = jnp.maximum(h2, 0.0)

    # fc3: N=1 head kept off the MXU -> VPU multiply + XLU lane reduction,
    # which overlaps with the MXU work of the next pipelined tile.
    q = jnp.sum(h2 * w3_ref[...], axis=-1, keepdims=True) + b3_ref[...]
    o_ref[...] = q.astype(o_ref.dtype)


# ----------------------------- wrapper ---------------------------------------
def _round_up(x, m):
    return ((x + m - 1) // m) * m


def critic_forward(state, action, params, *, block_m=512):
    """state: [B, S], action: [B, A] -> q: [B, 1] (float32)."""
    w1s, w1a, b1, w2, b2, w3, b3 = params
    B, S = state.shape
    A = action.shape[1]
    H = w2.shape[0]

    # Tiny batches: shrink the tile (multiple of 8 sublanes) instead of padding
    # a 2-row batch up to 512; large batches get 512-row pipelined tiles.
    bm = min(block_m, _round_up(B, 8))
    bm = _round_up(bm, 8)
    n_tiles = (B + bm - 1) // bm
    B_pad = n_tiles * bm
    if B_pad != B:
        pad = ((0, B_pad - B), (0, 0))
        state = jnp.pad(state, pad)
        action = jnp.pad(action, pad)

    batch_blk = lambda cols: pl.BlockSpec((bm, cols), lambda i: (i, 0))
    resident = lambda shape: pl.BlockSpec(shape, lambda i: (0, 0))  # VMEM-resident

    out = pl.pallas_call(
        critic_kernel,
        out_shape=jax.ShapeDtypeStruct((B_pad, 1), jnp.float32),
        grid=(n_tiles,),
        in_specs=[
            batch_blk(S),          # state tile   (pipelined over batch)
            batch_blk(A),          # action tile
            resident((S, H)),      # w1_s
            resident((A, H)),      # w1_a
            resident((1, H)),      # b1
            resident((H, H)),      # w2
            resident((1, H)),      # b2
            resident((1, H)),      # w3 (row vector)
            resident((1, 1)),      # b3
        ],
        out_specs=pl.BlockSpec((bm, 1), lambda i: (i, 0)),
        compiler_params=pltpu.CompilerParams(
            dimension_semantics=("parallel",),      # megacore on v7x
            vmem_limit_bytes=32 * 1024 * 1024,      # safe on 64 MiB (v7x) VMEM
        ),
    )(state, action, w1s, w1a, b1, w2, b2, w3, b3)
    return out[:B]


def init_params(key, state_dim, action_dim, hidden_dim):
    """PyTorch-Linear-like uniform init.  Weights stored [in, out]; fc1 weight
    is pre-split into state/action halves (the cat fusion); fc3 is a [1, H] row."""
    in1 = state_dim + action_dim
    k = jax.random.split(key, 6)

    def uni(kk, shape, fan_in):
        bound = 1.0 / jnp.sqrt(float(fan_in))
        return jax.random.uniform(kk, shape, jnp.float32, -bound, bound)

    w1 = uni(k[0], (in1, hidden_dim), in1)
    w1s, w1a = w1[:state_dim], w1[state_dim:]
    b1 = uni(k[1], (1, hidden_dim), in1)
    w2 = uni(k[2], (hidden_dim, hidden_dim), hidden_dim)
    b2 = uni(k[3], (1, hidden_dim), hidden_dim)
    w3 = uni(k[4], (1, hidden_dim), hidden_dim)
    b3 = uni(k[5], (1, 1), hidden_dim)
    return (w1s, w1a, b1, w2, b2, w3, b3)


def critic_reference(state, action, params):
    """Pure-JAX reference, written exactly as the PyTorch module (with cat)."""
    w1s, w1a, b1, w2, b2, w3, b3 = params
    x = jnp.concatenate([state, action], axis=1)
    w1 = jnp.concatenate([w1s, w1a], axis=0)
    h1 = jnp.maximum(x @ w1 + b1, 0.0)
    h2 = jnp.maximum(h1 @ w2 + b2, 0.0)
    return h2 @ w3.T + b3


# ----------------------------- main ------------------------------------------
if __name__ == "__main__":
    # Small batch / feature dims; hidden_dim = 256 as in the module (MXU-aligned).
    batch, state_dim, action_dim, hidden_dim = 2, 8, 4, 256

    key = jax.random.PRNGKey(0)
    k_s, k_a, k_p = jax.random.split(key, 3)

    state = jax.random.normal(k_s, (batch, state_dim), jnp.float32)
    action = jax.random.normal(k_a, (batch, action_dim), jnp.float32)
    params = init_params(k_p, state_dim, action_dim, hidden_dim)

    q = critic_forward(state, action, params)
    jax.block_until_ready(q)

    q_ref = critic_reference(state, action, params)
    assert q.shape == (batch, 1), q.shape
    assert jnp.allclose(q, q_ref, atol=1e-4, rtol=1e-4), (q, q_ref)

    print("KERNEL_OK")
</pallas_src>

<mosaic_0001>
module attributes {stable_mosaic.version = 11 : i64} {
  func.func @critic_kernel(%arg0: i32, %arg1: memref<8x8xf32, #tpu.memory_space<vmem>>, %arg2: memref<8x4xf32, #tpu.memory_space<vmem>>, %arg3: memref<8x256xf32, #tpu.memory_space<vmem>>, %arg4: memref<4x256xf32, #tpu.memory_space<vmem>>, %arg5: memref<1x256xf32, #tpu.memory_space<vmem>>, %arg6: memref<256x256xf32, #tpu.memory_space<vmem>>, %arg7: memref<1x256xf32, #tpu.memory_space<vmem>>, %arg8: memref<1x256xf32, #tpu.memory_space<vmem>>, %arg9: memref<1x1xf32, #tpu.memory_space<vmem>>, %arg10: memref<8x1xf32, #tpu.memory_space<vmem>>) attributes {dimension_semantics = [#tpu.dimension_semantics<parallel>], iteration_bounds = array<i64: 1>, scalar_prefetch = 0 : i64, scratch_operands = 0 : i64, tpu.core_type = #tpu.core_type<tc>, window_params = [{transform_indices = @transform_0, window_bounds = array<i64: 8, 8>}, {transform_indices = @transform_1, window_bounds = array<i64: 8, 4>}, {pipeline_mode = #tpu.pipeline_mode<synchronous>, transform_indices = @transform_2, window_bounds = array<i64: 8, 256>}, {pipeline_mode = #tpu.pipeline_mode<synchronous>, transform_indices = @transform_3, window_bounds = array<i64: 4, 256>}, {pipeline_mode = #tpu.pipeline_mode<synchronous>, transform_indices = @transform_4, window_bounds = array<i64: 1, 256>}, {pipeline_mode = #tpu.pipeline_mode<synchronous>, transform_indices = @transform_5, window_bounds = array<i64: 256, 256>}, {pipeline_mode = #tpu.pipeline_mode<synchronous>, transform_indices = @transform_6, window_bounds = array<i64: 1, 256>}, {pipeline_mode = #tpu.pipeline_mode<synchronous>, transform_indices = @transform_7, window_bounds = array<i64: 1, 256>}, {pipeline_mode = #tpu.pipeline_mode<synchronous>, transform_indices = @transform_8, window_bounds = array<i64: 1, 1>}, {transform_indices = @transform_9, window_bounds = array<i64: 8, 1>}]} {
    %c0 = arith.constant 0 : index
    %c0_0 = arith.constant 0 : index
    %0 = vector.load %arg1[%c0, %c0_0] : memref<8x8xf32, #tpu.memory_space<vmem>>, vector<8x8xf32>
    %c0_1 = arith.constant 0 : index
    %c0_2 = arith.constant 0 : index
    %1 = vector.load %arg3[%c0_1, %c0_2] : memref<8x256xf32, #tpu.memory_space<vmem>>, vector<8x256xf32>
    %cst = arith.constant dense<0.000000e+00> : vector<8x256xf32>
    %2 = tpu.matmul %0, %1, %cst {dimension_numbers = #tpu.dot_dimension_numbers<[1], [0], [0], [1], [0, 0, 1, 1], [], []>} : vector<8x8xf32>, vector<8x256xf32>, vector<8x256xf32> -> vector<8x256xf32>
    %c0_3 = arith.constant 0 : index
    %c0_4 = arith.constant 0 : index
    %3 = vector.load %arg2[%c0_3, %c0_4] : memref<8x4xf32, #tpu.memory_space<vmem>>, vector<8x4xf32>
    %c0_5 = arith.constant 0 : index
    %c0_6 = arith.constant 0 : index
    %4 = vector.load %arg4[%c0_5, %c0_6] : memref<4x256xf32, #tpu.memory_space<vmem>>, vector<4x256xf32>
    %cst_7 = arith.constant dense<0.000000e+00> : vector<8x256xf32>
    %5 = tpu.matmul %3, %4, %cst_7 {dimension_numbers = #tpu.dot_dimension_numbers<[1], [0], [0], [1], [0, 0, 1, 1], [], []>} : vector<8x4xf32>, vector<4x256xf32>, vector<8x256xf32> -> vector<8x256xf32>
    %6 = arith.addf %2, %5 : vector<8x256xf32>
    %c0_8 = arith.constant 0 : index
    %c0_9 = arith.constant 0 : index
    %7 = vector.load %arg5[%c0_8, %c0_9] : memref<1x256xf32, #tpu.memory_space<vmem>>, vector<1x256xf32>
    %8 = vector.broadcast %7 : vector<1x256xf32> to vector<8x256xf32>
    %9 = arith.addf %6, %8 : vector<8x256xf32>
    %cst_10 = arith.constant 0.000000e+00 : f32
    %10 = vector.broadcast %cst_10 : f32 to vector<8x256xf32>
    %11 = arith.maximumf %9, %10 : vector<8x256xf32>
    %c0_11 = arith.constant 0 : index
    %c0_12 = arith.constant 0 : index
    %12 = vector.load %arg6[%c0_11, %c0_12] : memref<256x256xf32, #tpu.memory_space<vmem>>, vector<256x256xf32>
    %cst_13 = arith.constant dense<0.000000e+00> : vector<8x256xf32>
    %13 = tpu.matmul %11, %12, %cst_13 {dimension_numbers = #tpu.dot_dimension_numbers<[1], [0], [0], [1], [0, 0, 1, 1], [], []>} : vector<8x256xf32>, vector<256x256xf32>, vector<8x256xf32> -> vector<8x256xf32>
    %c0_14 = arith.constant 0 : index
    %c0_15 = arith.constant 0 : index
    %14 = vector.load %arg7[%c0_14, %c0_15] : memref<1x256xf32, #tpu.memory_space<vmem>>, vector<1x256xf32>
    %15 = vector.broadcast %14 : vector<1x256xf32> to vector<8x256xf32>
    %16 = arith.addf %13, %15 : vector<8x256xf32>
    %cst_16 = arith.constant 0.000000e+00 : f32
    %17 = vector.broadcast %cst_16 : f32 to vector<8x256xf32>
    %18 = arith.maximumf %16, %17 : vector<8x256xf32>
    %c0_17 = arith.constant 0 : index
    %c0_18 = arith.constant 0 : index
    %19 = vector.load %arg8[%c0_17, %c0_18] : memref<1x256xf32, #tpu.memory_space<vmem>>, vector<1x256xf32>
    %20 = vector.broadcast %19 : vector<1x256xf32> to vector<8x256xf32>
    %21 = arith.mulf %18, %20 : vector<8x256xf32>
    %cst_19 = arith.constant dense<0.000000e+00> : vector<8xf32>
    %22 = vector.multi_reduction <add>, %21, %cst_19 [1] : vector<8x256xf32> to vector<8xf32>
    %23 = vector.shape_cast %22 : vector<8xf32> to vector<8x1xf32>
    %c0_20 = arith.constant 0 : index
    %c0_21 = arith.constant 0 : index
    %24 = vector.load %arg9[%c0_20, %c0_21] : memref<1x1xf32, #tpu.memory_space<vmem>>, vector<1x1xf32>
    %25 = vector.broadcast %24 : vector<1x1xf32> to vector<8x1xf32>
    %26 = arith.addf %23, %25 : vector<8x1xf32>
    %c0_22 = arith.constant 0 : index
    %c0_23 = arith.constant 0 : index
    %27 = vector.load %arg10[%c0_22, %c0_23] : memref<8x1xf32, #tpu.memory_space<vmem>>, vector<8x1xf32>
    tpu.vector_store %arg10[%c0_22, %c0_23], %26 {strides = array<i32>} : memref<8x1xf32, #tpu.memory_space<vmem>>, vector<8x1xf32>,
    return
  }
  func.func @transform_0(%arg0: i32) -> (i32, i32) {
    %c0_i32 = arith.constant 0 : i32
    %c0_i32_0 = arith.constant 0 : i32
    return %arg0, %c0_i32 : i32, i32
  }
  func.func @transform_1(%arg0: i32) -> (i32, i32) {
    %c0_i32 = arith.constant 0 : i32
    %c0_i32_0 = arith.constant 0 : i32
    return %arg0, %c0_i32 : i32, i32
  }
  func.func @transform_2(%arg0: i32) -> (i32, i32) {
    %c0_i32 = arith.constant 0 : i32
    %c0_i32_0 = arith.constant 0 : i32
    %c0_i32_1 = arith.constant 0 : i32
    return %c0_i32, %c0_i32_0 : i32, i32
  }
  func.func @transform_3(%arg0: i32) -> (i32, i32) {
    %c0_i32 = arith.constant 0 : i32
    %c0_i32_0 = arith.constant 0 : i32
    %c0_i32_1 = arith.constant 0 : i32
    return %c0_i32, %c0_i32_0 : i32, i32
  }
  func.func @transform_4(%arg0: i32) -> (i32, i32) {
    %c0_i32 = arith.constant 0 : i32
    %c0_i32_0 = arith.constant 0 : i32
    %c0_i32_1 = arith.constant 0 : i32
    return %c0_i32, %c0_i32_0 : i32, i32
  }
  func.func @transform_5(%arg0: i32) -> (i32, i32) {
    %c0_i32 = arith.constant 0 : i32
    %c0_i32_0 = arith.constant 0 : i32
    %c0_i32_1 = arith.constant 0 : i32
    return %c0_i32, %c0_i32_0 : i32, i32
  }
  func.func @transform_6(%arg0: i32) -> (i32, i32) {
    %c0_i32 = arith.constant 0 : i32
    %c0_i32_0 = arith.constant 0 : i32
    %c0_i32_1 = arith.constant 0 : i32
    return %c0_i32, %c0_i32_0 : i32, i32
  }
  func.func @transform_7(%arg0: i32) -> (i32, i32) {
    %c0_i32 = arith.constant 0 : i32
    %c0_i32_0 = arith.constant 0 : i32
    %c0_i32_1 = arith.constant 0 : i32
    return %c0_i32, %c0_i32_0 : i32, i32
  }
  func.func @transform_8(%arg0: i32) -> (i32, i32) {
    %c0_i32 = arith.constant 0 : i32
    %c0_i32_0 = arith.constant 0 : i32
    %c0_i32_1 = arith.constant 0 : i32
    return %c0_i32, %c0_i32_0 : i32, i32
  }
  func.func @transform_9(%arg0: i32) -> (i32, i32) {
    %c0_i32 = arith.constant 0 : i32
    %c0_i32_0 = arith.constant 0 : i32
    return %arg0, %c0_i32 : i32, i32
  }
}

</mosaic_0001>

<llo_original>
// kernel: tpu_custom_call.1
$region0: #{tpu_custom_call.1}
  #allocation0 [shape = 'u32[]', space=smem, size = 0x4, offset = 0x4, fixed_abs, tag = 'smem constant byte address 0x4 - core index']
  #allocation1 [shape = 'u32[144,128]{1,0:T(1,128)}', space=vmem, size = 0x12000, scoped, tag = 'internal scratch']
  #allocation2 [shape = 'f32[1,1]{1,0:T(1,128)S(1)}', space=vmem, size = 0x200, scoped, tag = 'scoped memory for tpu_custom_call.1']
  %s0 = inlined_call_operand.hbm [shape: f32[8,8], index: 0, kind: input, shape index: {}]
  %s1 = inlined_call_operand.vmem [shape: f32[8,4], index: 1, kind: input, shape index: {}]
  %s2 = inlined_call_operand.vmem [shape: f32[8,256], index: 2, kind: input, shape index: {}]
  %s3 = inlined_call_operand.hbm [shape: f32[4,256], index: 3, kind: input, shape index: {}]
  %s4 = inlined_call_operand.vmem [shape: f32[1,256], index: 4, kind: input, shape index: {}]
  %s5 = inlined_call_operand.hbm [shape: f32[256,256], index: 5, kind: input, shape index: {}]
  %s6 = inlined_call_operand.vmem [shape: f32[1,256], index: 6, kind: input, shape index: {}]
  %s7 = inlined_call_operand.vmem [shape: f32[1,256], index: 7, kind: input, shape index: {}]
  %s8 = inlined_call_operand.<no memory space> [shape: f32[1,1], index: 8, kind: input, shape index: {}]
  %s9 = inlined_call_operand.vmem [shape: f32[8,1], index: 9, kind: output, shape index: {}]
  %s10 = sld [smem:[#allocation0]]
  $region58: #{tpu_custom_call.1} parent=0
    _
  %s12 = ssub.s32 1, %s10
  %s13 = scalar_select 0, %s12, %s10
  %v14 = vstv %s8
  %15 = vst [vmem:[#allocation2] sm:$0x1] %v14
  $region1: #{tpu_custom_call.1} parent=0
    #allocation3 [shape = 'u8[4096]{0}', space=vmem, size = 0x1000, scoped, tag = 'input window, operand 0, single buffered']
    #allocation4 [shape = 's32[1]{0}', space=sflag, size = 0x4, scoped, tag = 'scoped memory for tpu_custom_call.1']
    #allocation5 [shape = 'u8[4096]{0}', space=vmem, size = 0x1000, scoped, tag = 'input window, operand 3, single buffered']
    #allocation6 [shape = 's32[1]{0}', space=sflag, size = 0x4, scoped, tag = 'scoped memory for tpu_custom_call.1']
    #allocation7 [shape = 'u8[262144]{0}', space=vmem, size = 0x40000, scoped, tag = 'input window, operand 5, single buffered']
    %16 = vsyncpa [#allocation4], 0
    %17 = vsyncpa [#allocation6], 0
    // Predicated region
    $region2: #{tpu_custom_call.1} parent=1 // pred_check
      _
    $region3: #{tpu_custom_call.1} parent=1 // pred_check_branch
      %19 = sbr.rel (0) target = $region5
    $region4: #{tpu_custom_call.1} parent=1 // pred_region
      %s21 = ssub.s32 128, 128
      %22 = vsyncadd [#allocation4], %s21
      %s24 = sshll.u32 [#allocation3], 4
      %s25 = int_to_ptr.vmem [resolvable:$true] %s24
      %27 = dma.hbm_to_vmem [thread:$0]  %s0, 128, %s25, [#allocation4]
    $region5: #{tpu_custom_call.1} parent=1 // pred_fallthru
      _
    // Predicated region
    $region6: #{tpu_custom_call.1} parent=1 // pred_check
      _
    $region7: #{tpu_custom_call.1} parent=1 // pred_check_branch
      %29 = sbr.rel (0) target = $region9
    $region8: #{tpu_custom_call.1} parent=1 // pred_region
      _
    $region9: #{tpu_custom_call.1} parent=1 // pred_fallthru
      _
    // Predicated region
    $region10: #{tpu_custom_call.1} parent=1 // pred_check
      _
    $region11: #{tpu_custom_call.1} parent=1 // pred_check_branch
      %31 = sbr.rel (0) target = $region13
    $region12: #{tpu_custom_call.1} parent=1 // pred_region
      _
    $region13: #{tpu_custom_call.1} parent=1 // pred_fallthru
      _
    // Predicated region
    $region14: #{tpu_custom_call.1} parent=1 // pred_check
      _
    $region15: #{tpu_custom_call.1} parent=1 // pred_check_branch
      %33 = sbr.rel (0) target = $region17
    $region16: #{tpu_custom_call.1} parent=1 // pred_region
      %s35 = ssub.s32 128, 128
      %36 = vsyncadd [#allocation6], %s35
      %s38 = sshll.u32 [#allocation5], 4
      %s39 = int_to_ptr.vmem [resolvable:$true] %s38
      %41 = dma.hbm_to_vmem [thread:$0]  %s3, 128, %s39, [#allocation6]
    $region17: #{tpu_custom_call.1} parent=1 // pred_fallthru
      _
    // Predicated region
    $region18: #{tpu_custom_call.1} parent=1 // pred_check
      _
    $region19: #{tpu_custom_call.1} parent=1 // pred_check_branch
      %43 = sbr.rel (0) target = $region21
    $region20: #{tpu_custom_call.1} parent=1 // pred_region
      _
    $region21: #{tpu_custom_call.1} parent=1 // pred_fallthru
      _
    // Predicated region
    $region22: #{tpu_custom_call.1} parent=1 // pred_check
      _
    $region23: #{tpu_custom_call.1} parent=1 // pred_check_branch
      %45 = sbr.rel (0) target = $region25
    $region24: #{tpu_custom_call.1} parent=1 // pred_region
      %s47 = ssub.s32 8192, 8192
      %48 = vsyncadd [#allocation6], %s47
      %s49 = sshll.u32 [#allocation7], 4
      %s50 = int_to_ptr.vmem [resolvable:$true] %s49
      %55 = dma.hbm_to_vmem [thread:$0]  %s5, 8192, %s50, [#allocation6], 256, 256, 16
    $region25: #{tpu_custom_call.1} parent=1 // pred_fallthru
      _
    // Predicated region
    $region26: #{tpu_custom_call.1} parent=1 // pred_check
      _
    $region27: #{tpu_custom_call.1} parent=1 // pred_check_branch
      %57 = sbr.rel (0) target = $region29
    $region28: #{tpu_custom_call.1} parent=1 // pred_region
      _
    $region29: #{tpu_custom_call.1} parent=1 // pred_fallthru
      _
    // Predicated region
    $region30: #{tpu_custom_call.1} parent=1 // pred_check
      _
    $region31: #{tpu_custom_call.1} parent=1 // pred_check_branch
      %59 = sbr.rel (0) target = $region33
    $region32: #{tpu_custom_call.1} parent=1 // pred_region
      _
    $region33: #{tpu_custom_call.1} parent=1 // pred_fallthru
      _
    // Predicated region
    $region34: #{tpu_custom_call.1} parent=1 // pred_check
      _
    $region35: #{tpu_custom_call.1} parent=1 // pred_check_branch
      %61 = sbr.rel (0) target = $region37
    $region36: #{tpu_custom_call.1} parent=1 // pred_region
      _
    $region37: #{tpu_custom_call.1} parent=1 // pred_fallthru
      _
    // Predicated region
    $region38: #{tpu_custom_call.1} parent=1 // pred_check
      _
    $region39: #{tpu_custom_call.1} parent=1 // pred_check_branch
      %63 = sbr.rel (0) target = $region41
    $region40: #{tpu_custom_call.1} parent=1 // pred_region
      %64 = dma.done [#allocation4], 128
    $region41: #{tpu_custom_call.1} parent=1 // pred_fallthru
      _
    // Predicated region
    $region42: #{tpu_custom_call.1} parent=1 // pred_check
      _
    $region43: #{tpu_custom_call.1} parent=1 // pred_check_branch
      %66 = sbr.rel (0) target = $region45
    $region44: #{tpu_custom_call.1} parent=1 // pred_region
      %67 = dma.done [#allocation6], 128
    $region45: #{tpu_custom_call.1} parent=1 // pred_fallthru
      _
    // Predicated region
    $region46: #{tpu_custom_call.1} parent=1 // pred_check
      _
    $region47: #{tpu_custom_call.1} parent=1 // pred_check_branch
      %69 = sbr.rel (0) target = $region49
    $region48: #{tpu_custom_call.1} parent=1 // pred_region
      %70 = dma.done [#allocation6], 8192
    $region49: #{tpu_custom_call.1} parent=1 // pred_fallthru
      _
    %v71 = vld [vmem:[#allocation3] sm:$0xff]
    %v72 = vld [vmem:[%s2] sm:$0xff]
    %v73 = vld [vmem:[%s2 + $0x8] sm:$0xff]
    %v74 = vld [vmem:[%s1] sm:$0xff]
    %v75 = vld [vmem:[#allocation5] sm:$0xff]
    %v77 = vcombine.high %v75, %v75
    %vm78 = vcmask 31744
    %v80 = vsel %vm78, %v74, 0
    %vm82 = vcmask 1043456
    %v83 = vsel %vm82, %v75, 0
    %v85 = vsel %vm82, %v77, 0
    %87 = vmatprep.subr.mxu0 0.0
    %88 = vmatpush1.msra.mxu0 0.0
    %89 = vmatprep.subr.mxu0 0.0
    %90 = vmatpush1.msra.mxu0 0.0
    %91 = vmatprep.subr.mxu0 0.0
    %92 = vmatpush1.msra.mxu0 0.0
    %93 = vmatprep.subr.mxu0 0.0
    %94 = vmatpush1.msra.mxu0 0.0
    %95 = vmatprep.subr.mxu0 0.0
    %96 = vmatpush1.msra.mxu0 0.0
    %97 = vmatprep.subr.mxu0 0.0
    %98 = vmatpush1.msra.mxu0 0.0
    %99 = vmatprep.subr.mxu0 0.0
    %100 = vmatpush1.msra.mxu0 0.0
    %101 = vmatprep.subr.mxu0 0.0
    %102 = vmatpush1.msra.mxu0 0.0
    %103 = vmatprep.subr.mxu0 0.0
    %104 = vmatpush1.msra.mxu0 0.0
    %105 = vmatprep.subr.mxu0 0.0
    %106 = vmatpush1.msra.mxu0 0.0
    %107 = vmatprep.subr.mxu0 0.0
    %108 = vmatpush1.msra.mxu0 0.0
    %109 = vmatprep.subr.mxu0 0.0
    %110 = vmatpush1.msra.mxu0 0.0
    %111 = vmatprep.subr.mxu0 0.0
    %112 = vmatpush1.msra.mxu0 0.0
    %113 = vmatprep.subr.mxu0 0.0
    %114 = vmatpush1.msra.mxu0 0.0
    %115 = vmatprep.subr.mxu0 0.0
    %116 = vmatpush1.msra.mxu0 0.0
    %117 = vmatprep.subr.mxu0 %v85
    %118 = vmatpush1.msra.mxu0 %v83
    %119 = vmatprep.subr.mxu0 0.0
    %120 = vmatpush2.msra.mxu0 0.0
    %121 = vmatprep.subr.mxu0 0.0
    %122 = vmatpush2.msra.mxu0 0.0
    %123 = vmatprep.subr.mxu0 0.0
    %124 = vmatpush2.msra.mxu0 0.0
    %125 = vmatprep.subr.mxu0 0.0
    %126 = vmatpush2.msra.mxu0 0.0
    %127 = vmatprep.subr.mxu0 0.0
    %128 = vmatpush2.msra.mxu0 0.0
    %129 = vmatprep.subr.mxu0 0.0
    %130 = vmatpush2.msra.mxu0 0.0
    %131 = vmatprep.subr.mxu0 0.0
    %132 = vmatpush2.msra.mxu0 0.0
    %133 = vmatprep.subr.mxu0 0.0
    %134 = vmatpush2.msra.mxu0 0.0
    %135 = vmatprep.subr.mxu0 0.0
    %136 = vmatpush2.msra.mxu0 0.0
    %137 = vmatprep.subr.mxu0 0.0
    %138 = vmatpush2.msra.mxu0 0.0
    %139 = vmatprep.subr.mxu0 0.0
    %140 = vmatpush2.msra.mxu0 0.0
    %141 = vmatprep.subr.mxu0 0.0
    %142 = vmatpush2.msra.mxu0 0.0
    %143 = vmatprep.subr.mxu0 0.0
    %144 = vmatpush2.msra.mxu0 0.0
    %145 = vmatprep.subr.mxu0 0.0
    %146 = vmatpush2.msra.mxu0 0.0
    %147 = vmatprep.subr.mxu0 0.0
    %148 = vmatpush2.msra.mxu0 0.0
    %149 = vmatprep.subr.mxu0 0.0
    %150 = vmatpush2.msra.mxu0 0.0
    %151 = vmatprep.mubr.f32.mxu0 0.0
    %152 = vmatmul.mubr.f32.gmra.mxu0 %v80
    %v153 = vpop.f32.mrf.mxu0
    %v154 = vadd.f32 0.0, %v153
    %v155 = vpop.f32.mrf.mxu0
    %v156 = vadd.f32 0.0, %v155
    %157 = vdwg.mxu0
    %vm158 = vcmask 64512
    %v160 = vsel %vm158, %v71, 0
    %162 = vmatprep.subr.mxu0 0.0
    %163 = vmatpush1.msra.mxu0 0.0
    %164 = vmatprep.subr.mxu0 0.0
    %165 = vmatpush1.msra.mxu0 0.0
    %166 = vmatprep.subr.mxu0 0.0
    %167 = vmatpush1.msra.mxu0 0.0
    %168 = vmatprep.subr.mxu0 0.0
    %169 = vmatpush1.msra.mxu0 0.0
    %170 = vmatprep.subr.mxu0 0.0
    %171 = vmatpush1.msra.mxu0 0.0
    %172 = vmatprep.subr.mxu0 0.0
    %173 = vmatpush1.msra.mxu0 0.0
    %174 = vmatprep.subr.mxu0 0.0
    %175 = vmatpush1.msra.mxu0 0.0
    %176 = vmatprep.subr.mxu0 0.0
    %177 = vmatpush1.msra.mxu0 0.0
    %178 = vmatprep.subr.mxu0 0.0
    %179 = vmatpush1.msra.mxu0 0.0
    %180 = vmatprep.subr.mxu0 0.0
    %181 = vmatpush1.msra.mxu0 0.0
    %182 = vmatprep.subr.mxu0 0.0
    %183 = vmatpush1.msra.mxu0 0.0
    %184 = vmatprep.subr.mxu0 0.0
    %185 = vmatpush1.msra.mxu0 0.0
    %186 = vmatprep.subr.mxu0 0.0
    %187 = vmatpush1.msra.mxu0 0.0
    %188 = vmatprep.subr.mxu0 0.0
    %189 = vmatpush1.msra.mxu0 0.0
    %190 = vmatprep.subr.mxu0 0.0
    %191 = vmatpush1.msra.mxu0 0.0
    %192 = vmatprep.subr.mxu0 %v73
    %193 = vmatpush1.msra.mxu0 %v72
    %194 = vmatprep.subr.mxu0 0.0
    %195 = vmatpush2.msra.mxu0 0.0
    %196 = vmatprep.subr.mxu0 0.0
    %197 = vmatpush2.msra.mxu0 0.0
    %198 = vmatprep.subr.mxu0 0.0
    %199 = vmatpush2.msra.mxu0 0.0
    %200 = vmatprep.subr.mxu0 0.0
    %201 = vmatpush2.msra.mxu0 0.0
    %202 = vmatprep.subr.mxu0 0.0
    %203 = vmatpush2.msra.mxu0 0.0
    %204 = vmatprep.subr.mxu0 0.0
    %205 = vmatpush2.msra.mxu0 0.0
    %206 = vmatprep.subr.mxu0 0.0
    %207 = vmatpush2.msra.mxu0 0.0
    %208 = vmatprep.subr.mxu0 0.0
    %209 = vmatpush2.msra.mxu0 0.0
    %210 = vmatprep.subr.mxu0 0.0
    %211 = vmatpush2.msra.mxu0 0.0
    %212 = vmatprep.subr.mxu0 0.0
    %213 = vmatpush2.msra.mxu0 0.0
    %214 = vmatprep.subr.mxu0 0.0
    %215 = vmatpush2.msra.mxu0 0.0
    %216 = vmatprep.subr.mxu0 0.0
    %217 = vmatpush2.msra.mxu0 0.0
    %218 = vmatprep.subr.mxu0 0.0
    %219 = vmatpush2.msra.mxu0 0.0
    %220 = vmatprep.subr.mxu0 0.0
    %221 = vmatpush2.msra.mxu0 0.0
    %222 = vmatprep.subr.mxu0 0.0
    %223 = vmatpush2.msra.mxu0 0.0
    %224 = vmatprep.subr.mxu0 0.0
    %225 = vmatpush2.msra.mxu0 0.0
    %226 = vmatprep.mubr.f32.mxu0 0.0
    %227 = vmatmul.mubr.f32.gmra.mxu0 %v160
    %v228 = vpop.f32.mrf.mxu0
    %v229 = vadd.f32 %v154, %v228
    %v230 = vpop.f32.mrf.mxu0
    %v231 = vadd.f32 %v156, %v230
    %232 = vdwg.mxu0
    %v233 = vld [vmem:[%s4] sm:$0x3]
    %v235 = vlaneseq
    %v236 = vshrl.u32 %v235, 7
    %v237 = vsub.s32 0, %v236
    %v238 = vrot.slane %v233, %v237
    %v239 = vlaneseq
    %v240 = vshrl.u32 %v239, 7
    %v241 = vsub.s32 1, %v240
    %v242 = vrot.slane %v233, %v241
    %v245 = vadd.f32 %v229, %v238
    %v246 = vadd.f32 %v231, %v242
    %v247 = vmax.f32 %v245, 0.0
    %v248 = vmax.f32 %v246, 0.0
    %v249 = vld [vmem:[#allocation7] sm:$0xff]
    %v250 = vld [vmem:[#allocation7 + $0x8] sm:$0xff]
    %v251 = vld [vmem:[#allocation7 + $0x10] sm:$0xff]
    %v252 = vld [vmem:[#allocation7 + $0x18] sm:$0xff]
    %v253 = vld [vmem:[#allocation7 + $0x20] sm:$0xff]
    %v254 = vld [vmem:[#allocation7 + $0x28] sm:$0xff]
    %v255 = vld [vmem:[#allocation7 + $0x30] sm:$0xff]
    %v256 = vld [vmem:[#allocation7 + $0x38] sm:$0xff]
    %v257 = vld [vmem:[#allocation7 + $0x40] sm:$0xff]
    %v258 = vld [vmem:[#allocation7 + $0x48] sm:$0xff]
    %v259 = vld [vmem:[#allocation7 + $0x50] sm:$0xff]
    %v260 = vld [vmem:[#allocation7 + $0x58] sm:$0xff]
    %v261 = vld [vmem:[#allocation7 + $0x60] sm:$0xff]
    %v262 = vld [vmem:[#allocation7 + $0x68] sm:$0xff]
    %v263 = vld [vmem:[#allocation7 + $0x70] sm:$0xff]
    %v264 = vld [vmem:[#allocation7 + $0x78] sm:$0xff]
    %v265 = vld [vmem:[#allocation7 + $0x80] sm:$0xff]
    %v266 = vld [vmem:[#allocation7 + $0x88] sm:$0xff]
    %v267 = vld [vmem:[#allocation7 + $0x90] sm:$0xff]
    %v268 = vld [vmem:[#allocation7 + $0x98] sm:$0xff]
    %v269 = vld [vmem:[#allocation7 + $0xa0] sm:$0xff]
    %v270 = vld [vmem:[#allocation7 + $0xa8] sm:$0xff]
    %v271 = vld [vmem:[#allocation7 + $0xb0] sm:$0xff]
    %v272 = vld [vmem:[#allocation7 + $0xb8] sm:$0xff]
    %v273 = vld [vmem:[#allocation7 + $0xc0] sm:$0xff]
    %v274 = vld [vmem:[#allocation7 + $0xc8] sm:$0xff]
    %v275 = vld [vmem:[#allocation7 + $0xd0] sm:$0xff]
    %v276 = vld [vmem:[#allocation7 + $0xd8] sm:$0xff]
    %v277 = vld [vmem:[#allocation7 + $0xe0] sm:$0xff]
    %v278 = vld [vmem:[#allocation7 + $0xe8] sm:$0xff]
    %v279 = vld [vmem:[#allocation7 + $0xf0] sm:$0xff]
    %v280 = vld [vmem:[#allocation7 + $0xf8] sm:$0xff]
    %v281 = vld [vmem:[#allocation7 + $0x100] sm:$0xff]
    %v282 = vld [vmem:[#allocation7 + $0x108] sm:$0xff]
    %v283 = vld [vmem:[#allocation7 + $0x110] sm:$0xff]
    %v284 = vld [vmem:[#allocation7 + $0x118] sm:$0xff]
    %v285 = vld [vmem:[#allocation7 + $0x120] sm:$0xff]
    %v286 = vld [vmem:[#allocation7 + $0x128] sm:$0xff]
    %v287 = vld [vmem:[#allocation7 + $0x130] sm:$0xff]
    %v288 = vld [vmem:[#allocation7 + $0x138] sm:$0xff]
    %v289 = vld [vmem:[#allocation7 + $0x140] sm:$0xff]
    %v290 = vld [vmem:[#allocation7 + $0x148] sm:$0xff]
    %v291 = vld [vmem:[#allocation7 + $0x150] sm:$0xff]
    %v292 = vld [vmem:[#allocation7 + $0x158] sm:$0xff]
    %v293 = vld [vmem:[#allocation7 + $0x160] sm:$0xff]
    %v294 = vld [vmem:[#allocation7 + $0x168] sm:$0xff]
    %v295 = vld [vmem:[#allocation7 + $0x170] sm:$0xff]
    %v296 = vld [vmem:[#allocation7 + $0x178] sm:$0xff]
    %v297 = vld [vmem:[#allocation7 + $0x180] sm:$0xff]
    %v298 = vld [vmem:[#allocation7 + $0x188] sm:$0xff]
    %v299 = vld [vmem:[#allocation7 + $0x190] sm:$0xff]
    %v300 = vld [vmem:[#allocation7 + $0x198] sm:$0xff]
    %v301 = vld [vmem:[#allocation7 + $0x1a0] sm:$0xff]
    %v302 = vld [vmem:[#allocation7 + $0x1a8] sm:$0xff]
    %v303 = vld [vmem:[#allocation7 + $0x1b0] sm:$0xff]
    %v304 = vld [vmem:[#allocation7 + $0x1b8] sm:$0xff]
    %v305 = vld [vmem:[#allocation7 + $0x1c0] sm:$0xff]
    %v306 = vld [vmem:[#allocation7 + $0x1c8] sm:$0xff]
    %v307 = vld [vmem:[#allocation7 + $0x1d0] sm:$0xff]
    %v308 = vld [vmem:[#allocation7 + $0x1d8] sm:$0xff]
    %v309 = vld [vmem:[#allocation7 + $0x1e0] sm:$0xff]
    %v310 = vld [vmem:[#allocation7 + $0x1e8] sm:$0xff]
    %v311 = vld [vmem:[#allocation7 + $0x1f0] sm:$0xff]
    %v312 = vld [vmem:[#allocation7 + $0x1f8] sm:$0xff]
    %v313 = vld [vmem:[%s6] sm:$0x3]
    %v315 = vlaneseq
    %v316 = vshrl.u32 %v315, 7
    %v317 = vsub.s32 0, %v316
    %v318 = vrot.slane %v313, %v317
    %v319 = vlaneseq
    %v320 = vshrl.u32 %v319, 7
    %v321 = vsub.s32 1, %v320
    %v322 = vrot.slane %v313, %v321
    %325 = vmatprep.subr.mxu0 %v280
    %326 = vmatpush1.msra.mxu0 %v279
    %327 = vmatprep.subr.mxu0 %v278
    %328 = vmatpush1.msra.mxu0 %v277
    %329 = vmatprep.subr.mxu0 %v276
    %330 = vmatpush1.msra.mxu0 %v275
    %331 = vmatprep.subr.mxu0 %v274
    %332 = vmatpush1.msra.mxu0 %v273
    %333 = vmatprep.subr.mxu0 %v272
    %334 = vmatpush1.msra.mxu0 %v271
    %335 = vmatprep.subr.mxu0 %v270
    %336 = vmatpush1.msra.mxu0 %v269
    %337 = vmatprep.subr.mxu0 %v268
    %338 = vmatpush1.msra.mxu0 %v267
    %339 = vmatprep.subr.mxu0 %v266
    %340 = vmatpush1.msra.mxu0 %v265
    %341 = vmatprep.subr.mxu0 %v264
    %342 = vmatpush1.msra.mxu0 %v263
    %343 = vmatprep.subr.mxu0 %v262
    %344 = vmatpush1.msra.mxu0 %v261
    %345 = vmatprep.subr.mxu0 %v260
    %346 = vmatpush1.msra.mxu0 %v259
    %347 = vmatprep.subr.mxu0 %v258
    %348 = vmatpush1.msra.mxu0 %v257
    %349 = vmatprep.subr.mxu0 %v256
    %350 = vmatpush1.msra.mxu0 %v255
    %351 = vmatprep.subr.mxu0 %v254
    %352 = vmatpush1.msra.mxu0 %v253
    %353 = vmatprep.subr.mxu0 %v252
    %354 = vmatpush1.msra.mxu0 %v251
    %355 = vmatprep.subr.mxu0 %v250
    %356 = vmatpush1.msra.mxu0 %v249
    %357 = vmatprep.subr.mxu0 %v312
    %358 = vmatpush2.msra.mxu0 %v311
    %359 = vmatprep.subr.mxu0 %v310
    %360 = vmatpush2.msra.mxu0 %v309
    %361 = vmatprep.subr.mxu0 %v308
    %362 = vmatpush2.msra.mxu0 %v307
    %363 = vmatprep.subr.mxu0 %v306
    %364 = vmatpush2.msra.mxu0 %v305
    %365 = vmatprep.subr.mxu0 %v304
    %366 = vmatpush2.msra.mxu0 %v303
    %367 = vmatprep.subr.mxu0 %v302
    %368 = vmatpush2.msra.mxu0 %v301
    %369 = vmatprep.subr.mxu0 %v300
    %370 = vmatpush2.msra.mxu0 %v299
    %371 = vmatprep.subr.mxu0 %v298
    %372 = vmatpush2.msra.mxu0 %v297
    %373 = vmatprep.subr.mxu0 %v296
    %374 = vmatpush2.msra.mxu0 %v295
    %375 = vmatprep.subr.mxu0 %v294
    %376 = vmatpush2.msra.mxu0 %v293
    %377 = vmatprep.subr.mxu0 %v292
    %378 = vmatpush2.msra.mxu0 %v291
    %379 = vmatprep.subr.mxu0 %v290
    %380 = vmatpush2.msra.mxu0 %v289
    %381 = vmatprep.subr.mxu0 %v288
    %382 = vmatpush2.msra.mxu0 %v287
    %383 = vmatprep.subr.mxu0 %v286
    %384 = vmatpush2.msra.mxu0 %v285
    %385 = vmatprep.subr.mxu0 %v284
    %386 = vmatpush2.msra.mxu0 %v283
    %387 = vmatprep.subr.mxu0 %v282
    %388 = vmatpush2.msra.mxu0 %v281
    %389 = vmatprep.mubr.f32.mxu0 %v248
    %390 = vmatmul.mubr.f32.gmra.mxu0 %v247
    %v391 = vpop.f32.mrf.mxu0
    %v392 = vadd.f32 %v318, %v391
    %v393 = vpop.f32.mrf.mxu0
    %v394 = vadd.f32 %v322, %v393
    %395 = vdwg.mxu0
    %v396 = vmax.f32 %v392, 0.0
    %v397 = vmax.f32 %v394, 0.0
    %v398 = vld [vmem:[%s7] sm:$0x3]
    %v400 = vlaneseq
    %v401 = vshrl.u32 %v400, 7
    %v402 = vsub.s32 0, %v401
    %v403 = vrot.slane %v398, %v402
    %v404 = vlaneseq
    %v405 = vshrl.u32 %v404, 7
    %v406 = vsub.s32 1, %v405
    %v407 = vrot.slane %v398, %v406
    %v410 = vmul.f32 %v396, %v403
    %v411 = vmul.f32 %v397, %v407
    %v412 = vadd.f32 %v410, %v411
    %413 = vadd.xlane.f32.xlu0 %v412
    %v414 = vpop.xlane.xlu0 %413
    %v415 = vld [vmem:[#allocation2] sm:$0x1]
    %v417 = vlaneseq
    %v418 = vshrl.u32 %v417, 7
    %v419 = vsub.s32 0, %v418
    %v420 = vrot.slane %v415, %v419
    %v422 = vadd.f32 %v414, %v420
    %vm423 = vcmask 7168
    %424 = vst.msk [vmem:[%s9] sm:$0xff] %vm423, %v422
    // Predicated region
    $region50: #{tpu_custom_call.1} parent=1 // pred_check
      _
    $region51: #{tpu_custom_call.1} parent=1 // pred_check_branch
      %426 = sbr.rel (0) target = $region53
    $region52: #{tpu_custom_call.1} parent=1 // pred_region
      _
    $region53: #{tpu_custom_call.1} parent=1 // pred_fallthru
      _
    // Predicated region
    $region54: #{tpu_custom_call.1} parent=1 // pred_check
      _
    $region55: #{tpu_custom_call.1} parent=1 // pred_check_branch
      %428 = sbr.rel (0) target = $region57
    $region56: #{tpu_custom_call.1} parent=1 // pred_region
      _
    $region57: #{tpu_custom_call.1} parent=1 // pred_fallthru
      _
    %429 = vsyncpa [#allocation4], 1
    %430 = vsyncpa [#allocation6], 1

</llo_original>
